<compile_context>
chip_gen: v6e
topology: v6e:2x2x1
jax: 0.10.0
libtpu: 0.0.40
codegen_flags: <defaults>
</compile_context>

<pallas_src>
import jax
import jax.numpy as jnp
from jax.experimental import pallas as pl
from jax.experimental.pallas import tpu as pltpu


def _round_up(v: int, m: int) -> int:
    return ((v + m - 1) // m) * m


def _pick_time_tile(T: int, left_pad: int, batch: int) -> int:
    """Lane-dense time tile that divides T, covers the causal halo, and bounds VMEM."""
    if T > 512:
        # 512 first: already ~85% of the HBM roofline; bigger tiles buy nothing and
        # risk VMEM pressure on v7x (64 MiB physical).
        for tt in (512, 1024, 256, 128):
            if T % tt == 0 and tt >= left_pad:
                return tt
    # Keep >= 2 time tiles when batch == 1 so the ("parallel","parallel") grid can be
    # sharded across both v7x TensorCores.
    if batch == 1 and T >= 256 and T % 256 == 0 and (T // 2) >= max(left_pad, 128):
        return T // 2
    return T


def make_residual_conv_block(in_channels: int,
                             out_channels: int,
                             kernel_size: int,
                             dilation: int,
                             use_layer_norm: bool = True,
                             eps: float = 1e-5,
                             mxu_dtype=None):
    """Returns callable(x_ncl, params) -> (B, C_out, T) matching the PyTorch forward (eval)."""

    left_pad = (kernel_size - 1) * dilation
    has_downsample = in_channels != out_channels

    # bf16 MXU operands when the conv matmul is actually significant; tiny-channel
    # (pure HBM-bandwidth) configs keep the input dtype for exact numerical parity.
    if mxu_dtype is None and min(in_channels, out_channels) >= 64:
        mxu_dtype = jnp.bfloat16

    def forward(x_ncl, params):
        """x_ncl: (B, C_in, T) in PyTorch NCL layout."""
        B, C_in, T = x_ncl.shape
        assert C_in == in_channels

        TT = _pick_time_tile(T, left_pad, B)
        num_t = T // TT
        has_prev = (num_t > 1) and (left_pad > 0)

        # Halo block width: smallest 128-multiple covering left_pad (lane-aligned).
        halo_w = 0
        if left_pad > 0:
            halo_w = _round_up(left_pad, 128)
            if has_prev and (halo_w > TT or TT % halo_w != 0):
                halo_w = TT                      # fallback: fetch whole previous tile

        op_dtype = x_ncl.dtype if mxu_dtype is None else jnp.dtype(mxu_dtype)

        # --- trace-time weight prep (tiny; no full-activation copies) ---
        # conv1 weight (C_out, C_in, K) -> (K, C_out, C_in): per-tap slabs, no lane shuffles.
        w_taps = jnp.transpose(params["conv1_w"], (2, 0, 1)).astype(op_dtype)
        vec_cols = [params["conv1_b"]]
        if use_layer_norm:
            vec_cols += [params["ln_gamma"], params["ln_beta"]]
        if has_downsample:
            vec_cols += [params["down_b"]]
        vec = jnp.stack([c.astype(jnp.float32) for c in vec_cols], axis=1)   # (C_out, n_vec)
        if has_downsample:
            wd = params["down_w"][:, :, 0].astype(op_dtype)                  # (C_out, C_in)

        # --- kernel body (NCL: channels on sublanes, time on lanes -> lane-dense stores) ---
        def kernel(*refs):
            it = iter(refs)
            x_ref = next(it)                                   # (1, C_in, TT)
            halo_ref = next(it) if has_prev else None          # (1, C_in, halo_w)
            w_ref = next(it)                                   # (K, C_out, C_in)
            vec_ref = next(it)                                 # (C_out, n_vec)
            wd_ref = next(it) if has_downsample else None      # (C_out, C_in)
            o_ref = next(it)                                   # (1, C_out, TT)

            x_curr = x_ref[0]                                  # (C_in, TT)

            if left_pad > 0:
                if has_prev:
                    # First time tile: causal zero padding instead of prev-tile data.
                    gate = (pl.program_id(1) > 0).astype(x_curr.dtype)
                    halo = halo_ref[0] * gate
                else:
                    halo = jnp.zeros((in_channels, halo_w), x_curr.dtype)
                xwin = jnp.concatenate([halo, x_curr], axis=-1)  # (C_in, halo_w + TT) lane-aligned
                base = halo_w - left_pad
            else:
                xwin = x_curr
                base = 0

            # Causal dilated conv: K per-tap MXU dots accumulated in f32 vregs
            # (no VMEM stack scratch, no store/reload).
            acc = jnp.zeros((out_channels, TT), jnp.float32)
            for k in range(kernel_size):
                off = base + k * dilation
                tap = xwin[:, off:off + TT].astype(op_dtype)
                acc = acc + jnp.dot(w_ref[k], tap, preferred_element_type=jnp.float32)

            col = 0
            b1 = vec_ref[:, col:col + 1]; col += 1
            y = acc + b1

            if use_layer_norm:
                gamma = vec_ref[:, col:col + 1]; col += 1
                beta = vec_ref[:, col:col + 1]; col += 1
                mean = jnp.mean(y, axis=0, keepdims=True)
                yc = y - mean
                var = jnp.mean(yc * yc, axis=0, keepdims=True)   # two-pass: no cancellation
                y = yc * jax.lax.rsqrt(var + eps) * gamma + beta

            # Dropout: identity in eval mode.
            # TODO(synk): training-mode dropout (pltpu.prng_* mask) not implemented.

            if has_downsample:
                bd = vec_ref[:, col:col + 1]
                resid = jnp.dot(wd_ref[...], x_curr.astype(op_dtype),
                                preferred_element_type=jnp.float32) + bd
            else:
                resid = x_curr.astype(jnp.float32)

            o_ref[0] = jnp.maximum(y + resid, 0.0).astype(o_ref.dtype)

        # --- specs ---
        fixed2 = lambda b, t: (0, 0)
        fixed3 = lambda b, t: (0, 0, 0)
        in_specs = [pl.BlockSpec((1, in_channels, TT), lambda b, t: (b, 0, t))]
        inputs = [x_ncl]
        if has_prev:
            blocks_per_tile = TT // halo_w
            # Narrow halo view: the halo_w lanes immediately preceding the current tile.
            in_specs.append(pl.BlockSpec(
                (1, in_channels, halo_w),
                lambda b, t: (b, 0, jnp.maximum(t * blocks_per_tile - 1, 0))))
            inputs.append(x_ncl)
        in_specs.append(pl.BlockSpec((kernel_size, out_channels, in_channels), fixed3))
        inputs.append(w_taps)
        in_specs.append(pl.BlockSpec((out_channels, vec.shape[1]), fixed2))
        inputs.append(vec)
        if has_downsample:
            in_specs.append(pl.BlockSpec((out_channels, in_channels), fixed2))
            inputs.append(wd)

        # --- cost / VMEM hints ---
        itemsize = x_ncl.dtype.itemsize
        flops = 2 * B * T * kernel_size * in_channels * out_channels
        if has_downsample:
            flops += 2 * B * T * in_channels * out_channels
        flops += 10 * B * T * out_channels                    # LN + residual + ReLU
        w_bytes = (w_taps.size * w_taps.dtype.itemsize + vec.size * 4
                   + (wd.size * wd.dtype.itemsize if has_downsample else 0))
        in_bytes = B * T * in_channels * itemsize
        if has_prev:
            in_bytes += B * num_t * in_channels * halo_w * itemsize
        out_bytes = B * T * out_channels * itemsize
        cost = pl.CostEstimate(flops=flops,
                               transcendentals=(B * T if use_layer_norm else 0),
                               bytes_accessed=in_bytes + out_bytes + w_bytes)

        tile_vmem = 2 * (in_channels + out_channels) * TT * itemsize     # double-buffered x/out
        if has_prev:
            tile_vmem += 2 * in_channels * halo_w * itemsize
        tile_vmem += w_bytes
        vmem_limit = int(min(48 << 20, max(32 << 20, 4 * tile_vmem)))    # v7x-safe cap

        out = pl.pallas_call(
            kernel,
            out_shape=jax.ShapeDtypeStruct((B, out_channels, T), x_ncl.dtype),
            grid_spec=pltpu.PrefetchScalarGridSpec(
                num_scalar_prefetch=0,
                grid=(B, num_t),
                in_specs=in_specs,
                out_specs=pl.BlockSpec((1, out_channels, TT), lambda b, t: (b, 0, t)),
                scratch_shapes=[]),
            compiler_params=pltpu.CompilerParams(
                dimension_semantics=("parallel", "parallel"),
                vmem_limit_bytes=vmem_limit),
            cost_estimate=cost,
        )(*inputs)
        return out                                            # (B, C_out, T) — PyTorch NCL

    return forward


def init_params(key, in_channels, out_channels, kernel_size):
    """Deterministic synthetic parameters with the same shapes as the nn.Module."""
    ks = jax.random.split(key, 4)
    params = {
        "conv1_w": 0.1 * jax.random.normal(
            ks[0], (out_channels, in_channels, kernel_size), jnp.float32),
        "conv1_b": 0.1 * jax.random.normal(ks[1], (out_channels,), jnp.float32),
        "ln_gamma": jnp.ones((out_channels,), jnp.float32),
        "ln_beta": jnp.zeros((out_channels,), jnp.float32),
    }
    if in_channels != out_channels:
        params["down_w"] = 0.1 * jax.random.normal(
            ks[2], (out_channels, in_channels, 1), jnp.float32)
        params["down_b"] = 0.1 * jax.random.normal(
            ks[3], (out_channels,), jnp.float32)
    return params


def reference(x, params, out_channels, K, dilation, use_layer_norm, eps):
    """Pure-JAX reference of the PyTorch forward (eval mode)."""
    B, _, T = x.shape
    left_pad = (K - 1) * dilation
    xpad = jnp.pad(x, ((0, 0), (0, 0), (left_pad, 0)))
    conv = jnp.zeros((B, out_channels, T), jnp.float32)
    for k in range(K):
        xs = xpad[:, :, k * dilation:k * dilation + T]
        conv = conv + jnp.einsum("oc,bct->bot", params["conv1_w"][:, :, k], xs)
    conv = conv + params["conv1_b"][None, :, None]
    if use_layer_norm:
        mean = conv.mean(axis=1, keepdims=True)
        var = ((conv - mean) ** 2).mean(axis=1, keepdims=True)
        conv = (conv - mean) / jnp.sqrt(var + eps)
        conv = conv * params["ln_gamma"][None, :, None] + params["ln_beta"][None, :, None]
    if "down_w" in params:
        resid = (jnp.einsum("oc,bct->bot", params["down_w"][:, :, 0], x)
                 + params["down_b"][None, :, None])
    else:
        resid = x
    return jnp.maximum(conv + resid, 0.0)


if __name__ == "__main__":
    key = jax.random.PRNGKey(0)

    def run_case(B, C_in, C_out, T, K, dilation, seed_key):
        kx, kp = jax.random.split(seed_key)
        x = jax.random.normal(kx, (B, C_in, T), jnp.float32)      # PyTorch NCL input
        params = init_params(kp, C_in, C_out, K)
        block = make_residual_conv_block(C_in, C_out, K, dilation,
                                         use_layer_norm=True, eps=1e-5)
        out = jax.jit(lambda a: block(a, params))(x)
        jax.block_until_ready(out)
        ref = reference(x, params, C_out, K, dilation, True, 1e-5)
        assert out.shape == (B, C_out, T)
        assert bool(jnp.all(out >= 0.0))                          # ReLU output is non-negative
        assert bool(jnp.allclose(out, ref, rtol=1e-4, atol=1e-4)), \
            float(jnp.max(jnp.abs(out - ref)))

    k1, k2 = jax.random.split(key)
    # Small demo shape (single time tile, downsample residual branch).
    run_case(B=2, C_in=4, C_out=8, T=16, K=3, dilation=2, seed_key=k1)
    # Multi-tile case exercising the narrow causal-halo fetch and identity residual.
    run_case(B=1, C_in=8, C_out=8, T=1024, K=3, dilation=4, seed_key=k2)
    print("KERNEL_OK")
</pallas_src>

<mosaic_0001>
module attributes {stable_mosaic.version = 11 : i64} {
  func.func @kernel(%arg0: i32, %arg1: i32, %arg2: memref<1x4x16xf32, #tpu.memory_space<vmem>>, %arg3: memref<3x8x4xf32, #tpu.memory_space<vmem>>, %arg4: memref<8x4xf32, #tpu.memory_space<vmem>>, %arg5: memref<8x4xf32, #tpu.memory_space<vmem>>, %arg6: memref<1x8x16xf32, #tpu.memory_space<vmem>>) attributes {dimension_semantics = [#tpu.dimension_semantics<parallel>, #tpu.dimension_semantics<parallel>], iteration_bounds = array<i64: 2, 1>, scalar_prefetch = 0 : i64, scratch_operands = 0 : i64, tpu.core_type = #tpu.core_type<tc>, window_params = [{transform_indices = @transform_0, window_bounds = array<i64: 1, 4, 16>}, {pipeline_mode = #tpu.pipeline_mode<synchronous>, transform_indices = @transform_1, window_bounds = array<i64: 3, 8, 4>}, {pipeline_mode = #tpu.pipeline_mode<synchronous>, transform_indices = @transform_2, window_bounds = array<i64: 8, 4>}, {pipeline_mode = #tpu.pipeline_mode<synchronous>, transform_indices = @transform_3, window_bounds = array<i64: 8, 4>}, {transform_indices = @transform_4, window_bounds = array<i64: 1, 8, 16>}]} {
    %c0 = arith.constant 0 : index
    %c0_0 = arith.constant 0 : index
    %c0_1 = arith.constant 0 : index
    %0 = vector.load %arg2[%c0, %c0_0, %c0_1] : memref<1x4x16xf32, #tpu.memory_space<vmem>>, vector<1x4x16xf32>
    %1 = vector.shape_cast %0 : vector<1x4x16xf32> to vector<4x16xf32>
    %cst = arith.constant 0.000000e+00 : f32
    %2 = vector.broadcast %cst : f32 to vector<4x128xf32>
    %3 = tpu.concatenate %2, %1 in 1 : vector<4x128xf32>, vector<4x16xf32> -> vector<4x144xf32>
    %cst_2 = arith.constant 0.000000e+00 : f32
    %4 = vector.broadcast %cst_2 : f32 to vector<8x16xf32>
    %5 = vector.extract_strided_slice %3 {offsets = [0, 124], sizes = [4, 16], strides = [1, 1]} : vector<4x144xf32> to vector<4x16xf32>
    %c0_3 = arith.constant 0 : index
    %c0_4 = arith.constant 0 : index
    %c0_5 = arith.constant 0 : index
    %6 = vector.load %arg3[%c0_3, %c0_4, %c0_5] : memref<3x8x4xf32, #tpu.memory_space<vmem>>, vector<1x8x4xf32>
    %7 = vector.shape_cast %6 : vector<1x8x4xf32> to vector<8x4xf32>
    %cst_6 = arith.constant dense<0.000000e+00> : vector<8x16xf32>
    %8 = tpu.matmul %7, %5, %cst_6 {dimension_numbers = #tpu.dot_dimension_numbers<[1], [0], [0], [1], [0, 0, 1, 1], [], []>} : vector<8x4xf32>, vector<4x16xf32>, vector<8x16xf32> -> vector<8x16xf32>
    %9 = arith.addf %4, %8 : vector<8x16xf32>
    %10 = vector.extract_strided_slice %3 {offsets = [0, 126], sizes = [4, 16], strides = [1, 1]} : vector<4x144xf32> to vector<4x16xf32>
    %c1 = arith.constant 1 : index
    %c0_7 = arith.constant 0 : index
    %c0_8 = arith.constant 0 : index
    %11 = vector.load %arg3[%c1, %c0_7, %c0_8] : memref<3x8x4xf32, #tpu.memory_space<vmem>>, vector<1x8x4xf32>
    %12 = vector.shape_cast %11 : vector<1x8x4xf32> to vector<8x4xf32>
    %cst_9 = arith.constant dense<0.000000e+00> : vector<8x16xf32>
    %13 = tpu.matmul %12, %10, %cst_9 {dimension_numbers = #tpu.dot_dimension_numbers<[1], [0], [0], [1], [0, 0, 1, 1], [], []>} : vector<8x4xf32>, vector<4x16xf32>, vector<8x16xf32> -> vector<8x16xf32>
    %14 = arith.addf %9, %13 : vector<8x16xf32>
    %15 = vector.extract_strided_slice %3 {offsets = [0, 128], sizes = [4, 16], strides = [1, 1]} : vector<4x144xf32> to vector<4x16xf32>
    %c2 = arith.constant 2 : index
    %c0_10 = arith.constant 0 : index
    %c0_11 = arith.constant 0 : index
    %16 = vector.load %arg3[%c2, %c0_10, %c0_11] : memref<3x8x4xf32, #tpu.memory_space<vmem>>, vector<1x8x4xf32>
    %17 = vector.shape_cast %16 : vector<1x8x4xf32> to vector<8x4xf32>
    %cst_12 = arith.constant dense<0.000000e+00> : vector<8x16xf32>
    %18 = tpu.matmul %17, %15, %cst_12 {dimension_numbers = #tpu.dot_dimension_numbers<[1], [0], [0], [1], [0, 0, 1, 1], [], []>} : vector<8x4xf32>, vector<4x16xf32>, vector<8x16xf32> -> vector<8x16xf32>
    %19 = arith.addf %14, %18 : vector<8x16xf32>
    %c0_13 = arith.constant 0 : index
    %c0_14 = arith.constant 0 : index
    %20 = vector.load %arg4[%c0_13, %c0_14] : memref<8x4xf32, #tpu.memory_space<vmem>>, vector<8x1xf32>
    %21 = vector.broadcast %20 : vector<8x1xf32> to vector<8x16xf32>
    %22 = arith.addf %19, %21 : vector<8x16xf32>
    %c0_15 = arith.constant 0 : index
    %c1_16 = arith.constant 1 : index
    %23 = vector.load %arg4[%c0_15, %c1_16] : memref<8x4xf32, #tpu.memory_space<vmem>>, vector<8x1xf32>
    %c0_17 = arith.constant 0 : index
    %c2_18 = arith.constant 2 : index
    %24 = vector.load %arg4[%c0_17, %c2_18] : memref<8x4xf32, #tpu.memory_space<vmem>>, vector<8x1xf32>
    %cst_19 = arith.constant dense<0.000000e+00> : vector<16xf32>
    %25 = vector.multi_reduction <add>, %22, %cst_19 [0] : vector<8x16xf32> to vector<16xf32>
    %26 = vector.shape_cast %25 : vector<16xf32> to vector<1x16xf32>
    %cst_20 = arith.constant 8.000000e+00 : f32
    %27 = vector.broadcast %cst_20 : f32 to vector<1x16xf32>
    %28 = arith.divf %26, %27 : vector<1x16xf32>
    %29 = vector.broadcast %28 : vector<1x16xf32> to vector<8x16xf32>
    %30 = arith.subf %22, %29 : vector<8x16xf32>
    %31 = arith.mulf %30, %30 : vector<8x16xf32>
    %cst_21 = arith.constant dense<0.000000e+00> : vector<16xf32>
    %32 = vector.multi_reduction <add>, %31, %cst_21 [0] : vector<8x16xf32> to vector<16xf32>
    %33 = vector.shape_cast %32 : vector<16xf32> to vector<1x16xf32>
    %cst_22 = arith.constant 8.000000e+00 : f32
    %34 = vector.broadcast %cst_22 : f32 to vector<1x16xf32>
    %35 = arith.divf %33, %34 : vector<1x16xf32>
    %cst_23 = arith.constant 9.99999974E-6 : f32
    %36 = vector.broadcast %cst_23 : f32 to vector<1x16xf32>
    %37 = arith.addf %35, %36 : vector<1x16xf32>
    %38 = math.rsqrt %37 : vector<1x16xf32>
    %39 = vector.broadcast %38 : vector<1x16xf32> to vector<8x16xf32>
    %40 = arith.mulf %30, %39 : vector<8x16xf32>
    %41 = vector.broadcast %23 : vector<8x1xf32> to vector<8x16xf32>
    %42 = arith.mulf %40, %41 : vector<8x16xf32>
    %43 = vector.broadcast %24 : vector<8x1xf32> to vector<8x16xf32>
    %44 = arith.addf %42, %43 : vector<8x16xf32>
    %c0_24 = arith.constant 0 : index
    %c3 = arith.constant 3 : index
    %45 = vector.load %arg4[%c0_24, %c3] : memref<8x4xf32, #tpu.memory_space<vmem>>, vector<8x1xf32>
    %c0_25 = arith.constant 0 : index
    %c0_26 = arith.constant 0 : index
    %46 = vector.load %arg5[%c0_25, %c0_26] : memref<8x4xf32, #tpu.memory_space<vmem>>, vector<8x4xf32>
    %cst_27 = arith.constant dense<0.000000e+00> : vector<8x16xf32>
    %47 = tpu.matmul %46, %1, %cst_27 {dimension_numbers = #tpu.dot_dimension_numbers<[1], [0], [0], [1], [0, 0, 1, 1], [], []>} : vector<8x4xf32>, vector<4x16xf32>, vector<8x16xf32> -> vector<8x16xf32>
    %48 = vector.broadcast %45 : vector<8x1xf32> to vector<8x16xf32>
    %49 = arith.addf %47, %48 : vector<8x16xf32>
    %50 = arith.addf %44, %49 : vector<8x16xf32>
    %cst_28 = arith.constant 0.000000e+00 : f32
    %51 = vector.broadcast %cst_28 : f32 to vector<8x16xf32>
    %52 = arith.maximumf %50, %51 : vector<8x16xf32>
    %c0_29 = arith.constant 0 : index
    %c0_30 = arith.constant 0 : index
    %c0_31 = arith.constant 0 : index
    %53 = vector.load %arg6[%c0_29, %c0_30, %c0_31] : memref<1x8x16xf32, #tpu.memory_space<vmem>>, vector<1x8x16xf32>
    %54 = vector.shape_cast %53 : vector<1x8x16xf32> to vector<8x16xf32>
    %55 = vector.shape_cast %52 : vector<8x16xf32> to vector<1x8x16xf32>
    tpu.vector_store %arg6[%c0_29, %c0_30, %c0_31], %55 {strides = array<i32>} : memref<1x8x16xf32, #tpu.memory_space<vmem>>, vector<1x8x16xf32>,
    return
  }
  func.func @transform_0(%arg0: i32, %arg1: i32) -> (i32, i32, i32) {
    %c0_i32 = arith.constant 0 : i32
    %c0_i32_0 = arith.constant 0 : i32
    return %arg0, %c0_i32, %arg1 : i32, i32, i32
  }
  func.func @transform_1(%arg0: i32, %arg1: i32) -> (i32, i32, i32) {
    %c0_i32 = arith.constant 0 : i32
    %c0_i32_0 = arith.constant 0 : i32
    %c0_i32_1 = arith.constant 0 : i32
    %c0_i32_2 = arith.constant 0 : i32
    return %c0_i32, %c0_i32_0, %c0_i32_1 : i32, i32, i32
  }
  func.func @transform_2(%arg0: i32, %arg1: i32) -> (i32, i32) {
    %c0_i32 = arith.constant 0 : i32
    %c0_i32_0 = arith.constant 0 : i32
    %c0_i32_1 = arith.constant 0 : i32
    return %c0_i32, %c0_i32_0 : i32, i32
  }
  func.func @transform_3(%arg0: i32, %arg1: i32) -> (i32, i32) {
    %c0_i32 = arith.constant 0 : i32
    %c0_i32_0 = arith.constant 0 : i32
    %c0_i32_1 = arith.constant 0 : i32
    return %c0_i32, %c0_i32_0 : i32, i32
  }
  func.func @transform_4(%arg0: i32, %arg1: i32) -> (i32, i32, i32) {
    %c0_i32 = arith.constant 0 : i32
    %c0_i32_0 = arith.constant 0 : i32
    return %arg0, %c0_i32, %arg1 : i32, i32, i32
  }
}

</mosaic_0001>

<llo_original>
// kernel: _lambda_.1
$region0: #{_lambda_.1}
  #allocation0 [shape = 'u32[]', space=smem, size = 0x4, offset = 0x4, fixed_abs, tag = 'smem constant byte address 0x4 - core index']
  #allocation1 [shape = 'u32[144,128]{1,0:T(1,128)}', space=vmem, size = 0x12000, scoped, tag = 'internal scratch']
  %s0 = inlined_call_operand.hbm [shape: f32[2,4,16], index: 0, kind: input, shape index: {}]
  %s1 = inlined_call_operand.hbm [shape: f32[3,8,4], index: 1, kind: input, shape index: {}]
  %s2 = inlined_call_operand.hbm [shape: f32[8,4], index: 2, kind: input, shape index: {}]
  %s3 = inlined_call_operand.hbm [shape: f32[8,4], index: 3, kind: input, shape index: {}]
  %s4 = inlined_call_operand.hbm [shape: f32[2,8,16], index: 4, kind: output, shape index: {}]
  %s5 = sld [smem:[#allocation0]]
  $region65: #{_lambda_.1} parent=0
    _
  %s7 = ssub.s32 1, %s5
  %s8 = scalar_select 0, %s7, %s5
  $region1: #{_lambda_.1} parent=0
    #allocation2 [shape = 'u8[4096]{0}', space=vmem, size = 0x1000, scoped, tag = 'input window, operand 0']
    #allocation3 [shape = 's32[2]{0}', space=sflag, size = 0x8, scoped, tag = 'scoped memory for _lambda_.1']
    #allocation4 [shape = 's32[2]{0}', space=sflag, size = 0x8, scoped, tag = 'scoped memory for _lambda_.1']
    #allocation5 [shape = 'u8[12288]{0}', space=vmem, size = 0x3000, scoped, tag = 'input window, operand 1, single buffered']
    #allocation6 [shape = 's32[1]{0}', space=sflag, size = 0x4, scoped, tag = 'scoped memory for _lambda_.1']
    #allocation7 [shape = 'u8[4096]{0}', space=vmem, size = 0x1000, scoped, tag = 'input window, operand 2, single buffered']
    #allocation8 [shape = 'u8[4096]{0}', space=vmem, size = 0x1000, scoped, tag = 'input window, operand 3, single buffered']
    #allocation9 [shape = 's32[1]{0}', space=sflag, size = 0x4, scoped, tag = 'scoped memory for _lambda_.1']
    #allocation10 [shape = 'u8[8192]{0}', space=vmem, size = 0x2000, scoped, tag = 'output window, operand 0']
    %9 = vsyncpa [#allocation3], 0
    %s10 = scalar_lea.sflag [#allocation3], 1
    %11 = vsyncpa %s10, 0
    %12 = vsyncpa [#allocation6], 0
    %13 = vsyncpa [#allocation9], 0
    %14 = vsyncpa [#allocation4], 0
    %s15 = scalar_lea.sflag [#allocation4], 1
    %16 = vsyncpa %s15, 0
    loop: start=0, step=1, limit=4
    $region2: #{_lambda_.1} parent=1 // loop_pre_header
      _
    $region3: #{_lambda_.1} parent=1 // loop_header
      %s18 = sphi 0, %s22
      %p19 = scmp.ge.s32.totalorder %s18, 4
      %s25 = sphi 0, %s37
      %s26 = sphi 0, %s33
      %s27 = sphi 0, %s25
      %s28 = sphi 0, %s26
      %s29 = sphi 0, %s27
      %s30 = sphi 0, %s28
      %s42 = sphi 0, %s44
      %s45 = sphi 0, %s42
      %s46 = sphi 0, %s45
      %s62 = sphi 0, %s46
      %s66 = sphi 0, %s66
      %s68 = sphi 0, %s66
      %s69 = sphi 0, %s68
      %s83 = sphi 0, %s69
      %s87 = sphi 0, %s87
      %s89 = sphi 0, %s87
      %s90 = sphi 0, %s89
      %s104 = sphi 0, %s90
      %s108 = sphi 0, %s108
      %s110 = sphi 0, %s108
      %s111 = sphi 0, %s110
      %s125 = sphi 0, %s111
      %s133 = sphi 0, %s135
      %s136 = sphi 0, %s133
      %s137 = sphi 0, %s136
      %s153 = sphi 0, %s137
    $region4: #{_lambda_.1} parent=1 // loop_header_branch
      %21 = sbr.rel (%p19) target = $region8
    $region5: #{_lambda_.1} parent=1 // loop_body
      %s23 = ssub.s32 %s18, 1
      %s24 = ssub.s32 %s18, 2
      %s31 = sadd.s32 1, %s26
      %p32 = scmp.ge.s32.totalorder %s31, 1
      %s33 = scalar_select %p32, 0, %s31
      %s34 = sadd.s32 1, %s25
      %s35 = scalar_select %p32, %s34, %s25
      %p36 = scmp.ge.s32.totalorder %s35, 2
      %s37 = scalar_select %p36, 0, %s35
      %s38 = ssub.s32 %s25, %s37
      %s39 = ssub.s32 %s26, %s33
      %s40 = sor.u32 %s38, %s39
      %p41 = scmp.eq.s32.totalorder %s40, 0
      %s43 = sadd.s32 %s42, 1
      %s44 = scalar_select %p41, %s42, %s43
      %p47 = pneg %p41
      %p48 = scmp.eq.s32.totalorder %s18, 1
      %p49 = por %p47, %p48
      %p50 = scmp.ne.s32.totalorder %s42, %s45
      %p51 = scmp.eq.s32.totalorder %s18, 0
      %p52 = por %p50, %p51
      %p53 = scmp.ne.s32.totalorder %s42, %s45
      %p54 = scmp.eq.s32.totalorder %s23, 1
      %p55 = por %p53, %p54
      %p56 = scmp.ne.s32.totalorder %s45, %s46
      %p57 = scmp.eq.s32.totalorder %s23, 0
      %p58 = por %p56, %p57
      %p59 = scmp.ne.s32.totalorder %s45, %s46
      %p60 = scmp.eq.s32.totalorder %s24, 1
      %p61 = por %p59, %p60
      %p63 = scmp.ne.s32.totalorder %s46, %s62
      %p64 = scmp.eq.s32.totalorder %s24, 0
      %p65 = por %p63, %p64
      %s67 = sadd.s32 %s66, 1
      %p70 = scmp.eq.s32.totalorder %s18, 1
      %p71 = scmp.ne.s32.totalorder %s66, %s68
      %p72 = scmp.eq.s32.totalorder %s18, 0
      %p73 = por %p71, %p72
      %p74 = scmp.ne.s32.totalorder %s66, %s68
      %p75 = scmp.eq.s32.totalorder %s23, 1
      %p76 = por %p74, %p75
      %p77 = scmp.ne.s32.totalorder %s68, %s69
      %p78 = scmp.eq.s32.totalorder %s23, 0
      %p79 = por %p77, %p78
      %p80 = scmp.ne.s32.totalorder %s68, %s69
      %p81 = scmp.eq.s32.totalorder %s24, 1
      %p82 = por %p80, %p81
      %p84 = scmp.ne.s32.totalorder %s69, %s83
      %p85 = scmp.eq.s32.totalorder %s24, 0
      %p86 = por %p84, %p85
      %s88 = sadd.s32 %s87, 1
      %p91 = scmp.eq.s32.totalorder %s18, 1
      %p92 = scmp.ne.s32.totalorder %s87, %s89
      %p93 = scmp.eq.s32.totalorder %s18, 0
      %p94 = por %p92, %p93
      %p95 = scmp.ne.s32.totalorder %s87, %s89
      %p96 = scmp.eq.s32.totalorder %s23, 1
      %p97 = por %p95, %p96
      %p98 = scmp.ne.s32.totalorder %s89, %s90
      %p99 = scmp.eq.s32.totalorder %s23, 0
      %p100 = por %p98, %p99
      %p101 = scmp.ne.s32.totalorder %s89, %s90
      %p102 = scmp.eq.s32.totalorder %s24, 1
      %p103 = por %p101, %p102
      %p105 = scmp.ne.s32.totalorder %s90, %s104
      %p106 = scmp.eq.s32.totalorder %s24, 0
      %p107 = por %p105, %p106
      %s109 = sadd.s32 %s108, 1
      %p112 = scmp.eq.s32.totalorder %s18, 1
      %p113 = scmp.ne.s32.totalorder %s108, %s110
      %p114 = scmp.eq.s32.totalorder %s18, 0
      %p115 = por %p113, %p114
      %p116 = scmp.ne.s32.totalorder %s108, %s110
      %p117 = scmp.eq.s32.totalorder %s23, 1
      %p118 = por %p116, %p117
      %p119 = scmp.ne.s32.totalorder %s110, %s111
      %p120 = scmp.eq.s32.totalorder %s23, 0
      %p121 = por %p119, %p120
      %p122 = scmp.ne.s32.totalorder %s110, %s111
      %p123 = scmp.eq.s32.totalorder %s24, 1
      %p124 = por %p122, %p123
      %p126 = scmp.ne.s32.totalorder %s111, %s125
      %p127 = scmp.eq.s32.totalorder %s24, 0
      %p128 = por %p126, %p127
      %s129 = ssub.s32 %s25, %s37
      %s130 = ssub.s32 %s26, %s33
      %s131 = sor.u32 %s129, %s130
      %p132 = scmp.eq.s32.totalorder %s131, 0
      %s134 = sadd.s32 %s133, 1
      %s135 = scalar_select %p132, %s133, %s134
      %p138 = pneg %p132
      %p139 = scmp.eq.s32.totalorder %s18, 1
      %p140 = por %p138, %p139
      %p141 = scmp.ne.s32.totalorder %s133, %s136
      %p142 = scmp.eq.s32.totalorder %s18, 0
      %p143 = por %p141, %p142
      %p144 = scmp.ne.s32.totalorder %s133, %s136
      %p145 = scmp.eq.s32.totalorder %s23, 1
      %p146 = por %p144, %p145
      %p147 = scmp.ne.s32.totalorder %s136, %s137
      %p148 = scmp.eq.s32.totalorder %s23, 0
      %p149 = por %p147, %p148
      %p150 = scmp.ne.s32.totalorder %s136, %s137
      %p151 = scmp.eq.s32.totalorder %s24, 1
      %p152 = por %p150, %p151
      %p154 = scmp.ne.s32.totalorder %s137, %s153
      %p155 = scmp.eq.s32.totalorder %s24, 0
      %p156 = por %p154, %p155
      %p157 = scmp.le.s32.totalorder 1, %s18
      %p158 = scmp.lt.s32.totalorder %s18, 3
      %p159 = pnand %p157, %p158
      %p160 = pneg %p159
      // Predicated region
      $region9: #{_lambda_.1} parent=5 // pred_check
        _
      $region10: #{_lambda_.1} parent=5 // pred_check_branch
        %162 = sbr.rel (%p159) target = $region12
      $region11: #{_lambda_.1} parent=5 // pred_region
        %s163 = ssub.s32 %s18, 1
        // Predicated region
        $region13: #{_lambda_.1} parent=11 // pred_check
          %p164 = pneg %p79
        $region14: #{_lambda_.1} parent=11 // pred_check_branch
          %166 = sbr.rel (%p164) target = $region16
        $region15: #{_lambda_.1} parent=11 // pred_region
          %s168 = ssub.s32 384, 384
          %169 = vsyncadd [#allocation6], %s168
          %s170 = sshll.u32 [#allocation5], 4
          %s171 = int_to_ptr.vmem [resolvable:$true] %s170
          %176 = dma.hbm_to_vmem [thread:$0]  %s1, 384, %s171, [#allocation6], 128, 128, 8
        $region16: #{_lambda_.1} parent=11 // pred_fallthru
          _
        // Predicated region
        $region17: #{_lambda_.1} parent=11 // pred_check
          %p177 = pneg %p100
        $region18: #{_lambda_.1} parent=11 // pred_check_branch
          %179 = sbr.rel (%p177) target = $region20
        $region19: #{_lambda_.1} parent=11 // pred_region
          %s181 = ssub.s32 128, 128
          %182 = vsyncadd [#allocation6], %s181
          %s184 = sshll.u32 [#allocation7], 4
          %s185 = int_to_ptr.vmem [resolvable:$true] %s184
          %187 = dma.hbm_to_vmem [thread:$0]  %s2, 128, %s185, [#allocation6]
        $region20: #{_lambda_.1} parent=11 // pred_fallthru
          _
        // Predicated region
        $region21: #{_lambda_.1} parent=11 // pred_check
          %p188 = pneg %p121
        $region22: #{_lambda_.1} parent=11 // pred_check_branch
          %190 = sbr.rel (%p188) target = $region24
        $region23: #{_lambda_.1} parent=11 // pred_region
          %s192 = ssub.s32 128, 128
          %193 = vsyncadd [#allocation9], %s192
          %s195 = sshll.u32 [#allocation8], 4
          %s196 = int_to_ptr.vmem [resolvable:$true] %s195
          %198 = dma.hbm_to_vmem [thread:$0]  %s3, 128, %s196, [#allocation9]
        $region24: #{_lambda_.1} parent=11 // pred_fallthru
          _
      $region12: #{_lambda_.1} parent=5 // pred_fallthru
        _
      %p199 = scmp.lt.s32.totalorder %s18, 2
      // Predicated region
      $region25: #{_lambda_.1} parent=5 // pred_check
        %p200 = pneg %p199
      $region26: #{_lambda_.1} parent=5 // pred_check_branch
        %202 = sbr.rel (%p200) target = $region28
      $region27: #{_lambda_.1} parent=5 // pred_region
        // Predicated region
        $region29: #{_lambda_.1} parent=27 // pred_check
          %p203 = pneg %p52
        $region30: #{_lambda_.1} parent=27 // pred_check_branch
          %205 = sbr.rel (%p203) target = $region32
        $region31: #{_lambda_.1} parent=27 // pred_region
          %s206 = sand.u32 %s42, 1
          %s207 = scalar_lea.sflag [#allocation3], %s206
          %s208 = sand.u32 %s42, 1
          %s209 = smul.addr %s208, 4
          %s210 = scalar_lea.vmem [#allocation2], %s209
          %s212 = ssub.s32 64, 64
          %213 = vsyncadd %s207, %s212
          %s214 = sadd.s32 %s26, %s25
          %s215 = smul.addr %s214, 64
          %s216 = scalar_lea.hbm %s0, %s215
          %s218 = sshll.u32 %s210, 4
          %s219 = int_to_ptr.vmem [resolvable:$true] %s218
          %221 = dma.hbm_to_vmem [thread:$0]  %s216, 64, %s219, %s207
        $region32: #{_lambda_.1} parent=27 // pred_fallthru
          _
      $region28: #{_lambda_.1} parent=5 // pred_fallthru
        _
      %p222 = scmp.le.s32.totalorder 1, %s18
      %p223 = scmp.lt.s32.totalorder %s18, 3
      %p224 = pnand %p222, %p223
      %p225 = pneg %p224
      // Predicated region
      $region33: #{_lambda_.1} parent=5 // pred_check
        _
      $region34: #{_lambda_.1} parent=5 // pred_check_branch
        %227 = sbr.rel (%p224) target = $region36
      $region35: #{_lambda_.1} parent=5 // pred_region
        %s228 = ssub.s32 %s18, 1
        %s229 = sand.u32 %s45, 1
        %s230 = scalar_lea.sflag [#allocation3], %s229
        %s231 = sand.u32 %s45, 1
        %s232 = smul.addr %s231, 4
        %s233 = scalar_lea.vmem [#allocation2], %s232
        // Predicated region
        $region37: #{_lambda_.1} parent=35 // pred_check
          %p234 = pneg %p58
        $region38: #{_lambda_.1} parent=35 // pred_check_branch
          %236 = sbr.rel (%p234) target = $region40
        $region39: #{_lambda_.1} parent=35 // pred_region
          %237 = dma.done %s230, 64
        $region40: #{_lambda_.1} parent=35 // pred_fallthru
          _
        // Predicated region
        $region41: #{_lambda_.1} parent=35 // pred_check
          %p238 = pneg %p79
        $region42: #{_lambda_.1} parent=35 // pred_check_branch
          %240 = sbr.rel (%p238) target = $region44
        $region43: #{_lambda_.1} parent=35 // pred_region
          %241 = dma.done [#allocation6], 384
        $region44: #{_lambda_.1} parent=35 // pred_fallthru
          _
        // Predicated region
        $region45: #{_lambda_.1} parent=35 // pred_check
          %p242 = pneg %p100
        $region46: #{_lambda_.1} parent=35 // pred_check_branch
          %244 = sbr.rel (%p242) target = $region48
        $region47: #{_lambda_.1} parent=35 // pred_region
          %245 = dma.done [#allocation6], 128
        $region48: #{_lambda_.1} parent=35 // pred_fallthru
          _
        // Predicated region
        $region49: #{_lambda_.1} parent=35 // pred_check
          %p246 = pneg %p121
        $region50: #{_lambda_.1} parent=35 // pred_check_branch
          %248 = sbr.rel (%p246) target = $region52
        $region51: #{_lambda_.1} parent=35 // pred_region
          %249 = dma.done [#allocation9], 128
        $region52: #{_lambda_.1} parent=35 // pred_fallthru
          _
        %s250 = sand.u32 %s45, 1
        %s251 = scalar_lea.sflag [#allocation3], %s250
        %s252 = sand.u32 %s45, 1
        %s253 = smul.addr %s252, 4
        %s254 = scalar_lea.vmem [#allocation2], %s253
        %p255 = pneg %p58
        %p256 = pneg %p55
        %p257 = pneg %p79
        %p258 = pneg %p76
        %p259 = pneg %p100
        %p260 = pneg %p97
        %p261 = pneg %p121
        %p262 = pneg %p118
        %p263 = pneg %p149
        %p264 = pneg %p146
        %s265 = sand.u32 %s136, 1
        %s266 = scalar_lea.sflag [#allocation4], %s265
        %s267 = sand.u32 %s136, 1
        %s268 = smul.addr %s267, 8
        %s269 = scalar_lea.vmem [#allocation10], %s268
        %v270 = vld [vmem:[%s233] sm:$0xf]
        %v271 = vld [vmem:[#allocation5] sm:$0xff]
        %s272 = scalar_lea.vmem [#allocation5], 8
        %v273 = vld [vmem:[%s272] sm:$0xff]
        %276 = vrot.lane.b32.xlu0 0.0, 2
        %v277 = vpop.permute.xlu0 %276
        %278 = vrot.lane.b32.xlu0 %v270, 2
        %v279 = vpop.permute.xlu0 %278
        %vm280 = vcmask 15360
        %v281 = vsel %vm280, %v277, %v279
        %vm282 = vcmask 31744
        %v284 = vsel %vm282, %v273, 0
        %vm286 = vcmask 1043456
        %v287 = vsel %vm286, %v281, 0
        %289 = vmatprep.subr.mxu0 0.0
        %290 = vmatpush1.msra.mxu0 0.0
        %291 = vmatprep.subr.mxu0 0.0
        %292 = vmatpush1.msra.mxu0 0.0
        %293 = vmatprep.subr.mxu0 0.0
        %294 = vmatpush1.msra.mxu0 0.0
        %295 = vmatprep.subr.mxu0 0.0
        %296 = vmatpush1.msra.mxu0 0.0
        %297 = vmatprep.subr.mxu0 0.0
        %298 = vmatpush1.msra.mxu0 0.0
        %299 = vmatprep.subr.mxu0 0.0
        %300 = vmatpush1.msra.mxu0 0.0
        %301 = vmatprep.subr.mxu0 0.0
        %302 = vmatpush1.msra.mxu0 0.0
        %303 = vmatprep.subr.mxu0 0.0
        %304 = vmatpush1.msra.mxu0 0.0
        %305 = vmatprep.subr.mxu0 0.0
        %306 = vmatpush1.msra.mxu0 0.0
        %307 = vmatprep.subr.mxu0 0.0
        %308 = vmatpush1.msra.mxu0 0.0
        %309 = vmatprep.subr.mxu0 0.0
        %310 = vmatpush1.msra.mxu0 0.0
        %311 = vmatprep.subr.mxu0 0.0
        %312 = vmatpush1.msra.mxu0 0.0
        %313 = vmatprep.subr.mxu0 0.0
        %314 = vmatpush1.msra.mxu0 0.0
        %315 = vmatprep.subr.mxu0 0.0
        %316 = vmatpush1.msra.mxu0 0.0
        %317 = vmatprep.subr.mxu0 0.0
        %318 = vmatpush1.msra.mxu0 0.0
        %319 = vmatprep.subr.mxu0 0.0
        %320 = vmatpush1.msra.mxu0 %v287
        %321 = vmatprep.subr.mxu0 0.0
        %322 = vmatpush2.msra.mxu0 0.0
        %323 = vmatprep.subr.mxu0 0.0
        %324 = vmatpush2.msra.mxu0 0.0
        %325 = vmatprep.subr.mxu0 0.0
        %326 = vmatpush2.msra.mxu0 0.0
        %327 = vmatprep.subr.mxu0 0.0
        %328 = vmatpush2.msra.mxu0 0.0
        %329 = vmatprep.subr.mxu0 0.0
        %330 = vmatpush2.msra.mxu0 0.0
        %331 = vmatprep.subr.mxu0 0.0
        %332 = vmatpush2.msra.mxu0 0.0
        %333 = vmatprep.subr.mxu0 0.0
        %334 = vmatpush2.msra.mxu0 0.0
        %335 = vmatprep.subr.mxu0 0.0
        %336 = vmatpush2.msra.mxu0 0.0
        %337 = vmatprep.subr.mxu0 0.0
        %338 = vmatpush2.msra.mxu0 0.0
        %339 = vmatprep.subr.mxu0 0.0
        %340 = vmatpush2.msra.mxu0 0.0
        %341 = vmatprep.subr.mxu0 0.0
        %342 = vmatpush2.msra.mxu0 0.0
        %343 = vmatprep.subr.mxu0 0.0
        %344 = vmatpush2.msra.mxu0 0.0
        %345 = vmatprep.subr.mxu0 0.0
        %346 = vmatpush2.msra.mxu0 0.0
        %347 = vmatprep.subr.mxu0 0.0
        %348 = vmatpush2.msra.mxu0 0.0
        %349 = vmatprep.subr.mxu0 0.0
        %350 = vmatpush2.msra.mxu0 0.0
        %351 = vmatprep.subr.mxu0 0.0
        %352 = vmatpush2.msra.mxu0 0.0
        %353 = vmatprep.mubr.f32.mxu0 0.0
        %354 = vmatmul.mubr.f32.gmra.mxu0 %v284
        %v355 = vpop.f32.mrf.mxu0
        %v356 = vadd.f32 0.0, %v355
        %v357 = vpop.f32.mrf.mxu0
        %358 = vdwg.mxu0
        %359 = vrot.lane.b32.xlu0 0.0, 4
        %v360 = vpop.permute.xlu0 %359
        %361 = vrot.lane.b32.xlu0 %v270, 4
        %v362 = vpop.permute.xlu0 %361
        %v363 = vsel %vm282, %v360, %v362
        %v365 = vsel %vm282, %v271, 0
        %v367 = vsel %vm286, %v363, 0
        %369 = vmatprep.subr.mxu0 0.0
        %370 = vmatpush1.msra.mxu0 0.0
        %371 = vmatprep.subr.mxu0 0.0
        %372 = vmatpush1.msra.mxu0 0.0
        %373 = vmatprep.subr.mxu0 0.0
        %374 = vmatpush1.msra.mxu0 0.0
        %375 = vmatprep.subr.mxu0 0.0
        %376 = vmatpush1.msra.mxu0 0.0
        %377 = vmatprep.subr.mxu0 0.0
        %378 = vmatpush1.msra.mxu0 0.0
        %379 = vmatprep.subr.mxu0 0.0
        %380 = vmatpush1.msra.mxu0 0.0
        %381 = vmatprep.subr.mxu0 0.0
        %382 = vmatpush1.msra.mxu0 0.0
        %383 = vmatprep.subr.mxu0 0.0
        %384 = vmatpush1.msra.mxu0 0.0
        %385 = vmatprep.subr.mxu0 0.0
        %386 = vmatpush1.msra.mxu0 0.0
        %387 = vmatprep.subr.mxu0 0.0
        %388 = vmatpush1.msra.mxu0 0.0
        %389 = vmatprep.subr.mxu0 0.0
        %390 = vmatpush1.msra.mxu0 0.0
        %391 = vmatprep.subr.mxu0 0.0
        %392 = vmatpush1.msra.mxu0 0.0
        %393 = vmatprep.subr.mxu0 0.0
        %394 = vmatpush1.msra.mxu0 0.0
        %395 = vmatprep.subr.mxu0 0.0
        %396 = vmatpush1.msra.mxu0 0.0
        %397 = vmatprep.subr.mxu0 0.0
        %398 = vmatpush1.msra.mxu0 0.0
        %399 = vmatprep.subr.mxu0 0.0
        %400 = vmatpush1.msra.mxu0 %v367
        %401 = vmatprep.subr.mxu0 0.0
        %402 = vmatpush2.msra.mxu0 0.0
        %403 = vmatprep.subr.mxu0 0.0
        %404 = vmatpush2.msra.mxu0 0.0
        %405 = vmatprep.subr.mxu0 0.0
        %406 = vmatpush2.msra.mxu0 0.0
        %407 = vmatprep.subr.mxu0 0.0
        %408 = vmatpush2.msra.mxu0 0.0
        %409 = vmatprep.subr.mxu0 0.0
        %410 = vmatpush2.msra.mxu0 0.0
        %411 = vmatprep.subr.mxu0 0.0
        %412 = vmatpush2.msra.mxu0 0.0
        %413 = vmatprep.subr.mxu0 0.0
        %414 = vmatpush2.msra.mxu0 0.0
        %415 = vmatprep.subr.mxu0 0.0
        %416 = vmatpush2.msra.mxu0 0.0
        %417 = vmatprep.subr.mxu0 0.0
        %418 = vmatpush2.msra.mxu0 0.0
        %419 = vmatprep.subr.mxu0 0.0
        %420 = vmatpush2.msra.mxu0 0.0
        %421 = vmatprep.subr.mxu0 0.0
        %422 = vmatpush2.msra.mxu0 0.0
        %423 = vmatprep.subr.mxu0 0.0
        %424 = vmatpush2.msra.mxu0 0.0
        %425 = vmatprep.subr.mxu0 0.0
        %426 = vmatpush2.msra.mxu0 0.0
        %427 = vmatprep.subr.mxu0 0.0
        %428 = vmatpush2.msra.mxu0 0.0
        %429 = vmatprep.subr.mxu0 0.0
        %430 = vmatpush2.msra.mxu0 0.0
        %431 = vmatprep.subr.mxu0 0.0
        %432 = vmatpush2.msra.mxu0 0.0
        %433 = vmatprep.mubr.f32.mxu0 0.0
        %434 = vmatmul.mubr.f32.gmra.mxu0 %v365
        %v435 = vpop.f32.mrf.mxu0
        %v436 = vadd.f32 %v356, %v435
        %v437 = vpop.f32.mrf.mxu0
        %438 = vdwg.mxu0
        %s439 = scalar_lea.vmem [#allocation5], 16
        %v440 = vld [vmem:[%s439] sm:$0xff]
        %v442 = vsel %vm282, %v440, 0
        %v444 = vsel %vm286, %v270, 0
        %446 = vmatprep.subr.mxu0 0.0
        %447 = vmatpush1.msra.mxu0 0.0
        %448 = vmatprep.subr.mxu0 0.0
        %449 = vmatpush1.msra.mxu0 0.0
        %450 = vmatprep.subr.mxu0 0.0
        %451 = vmatpush1.msra.mxu0 0.0
        %452 = vmatprep.subr.mxu0 0.0
        %453 = vmatpush1.msra.mxu0 0.0
        %454 = vmatprep.subr.mxu0 0.0
        %455 = vmatpush1.msra.mxu0 0.0
        %456 = vmatprep.subr.mxu0 0.0
        %457 = vmatpush1.msra.mxu0 0.0
        %458 = vmatprep.subr.mxu0 0.0
        %459 = vmatpush1.msra.mxu0 0.0
        %460 = vmatprep.subr.mxu0 0.0
        %461 = vmatpush1.msra.mxu0 0.0
        %462 = vmatprep.subr.mxu0 0.0
        %463 = vmatpush1.msra.mxu0 0.0
        %464 = vmatprep.subr.mxu0 0.0
        %465 = vmatpush1.msra.mxu0 0.0
        %466 = vmatprep.subr.mxu0 0.0
        %467 = vmatpush1.msra.mxu0 0.0
        %468 = vmatprep.subr.mxu0 0.0
        %469 = vmatpush1.msra.mxu0 0.0
        %470 = vmatprep.subr.mxu0 0.0
        %471 = vmatpush1.msra.mxu0 0.0
        %472 = vmatprep.subr.mxu0 0.0
        %473 = vmatpush1.msra.mxu0 0.0
        %474 = vmatprep.subr.mxu0 0.0
        %475 = vmatpush1.msra.mxu0 0.0
        %476 = vmatprep.subr.mxu0 0.0
        %477 = vmatpush1.msra.mxu0 %v444
        %478 = vmatprep.subr.mxu0 0.0
        %479 = vmatpush2.msra.mxu0 0.0
        %480 = vmatprep.subr.mxu0 0.0
        %481 = vmatpush2.msra.mxu0 0.0
        %482 = vmatprep.subr.mxu0 0.0
        %483 = vmatpush2.msra.mxu0 0.0
        %484 = vmatprep.subr.mxu0 0.0
        %485 = vmatpush2.msra.mxu0 0.0
        %486 = vmatprep.subr.mxu0 0.0
        %487 = vmatpush2.msra.mxu0 0.0
        %488 = vmatprep.subr.mxu0 0.0
        %489 = vmatpush2.msra.mxu0 0.0
        %490 = vmatprep.subr.mxu0 0.0
        %491 = vmatpush2.msra.mxu0 0.0
        %492 = vmatprep.subr.mxu0 0.0
        %493 = vmatpush2.msra.mxu0 0.0
        %494 = vmatprep.subr.mxu0 0.0
        %495 = vmatpush2.msra.mxu0 0.0
        %496 = vmatprep.subr.mxu0 0.0
        %497 = vmatpush2.msra.mxu0 0.0
        %498 = vmatprep.subr.mxu0 0.0
        %499 = vmatpush2.msra.mxu0 0.0
        %500 = vmatprep.subr.mxu0 0.0
        %501 = vmatpush2.msra.mxu0 0.0
        %502 = vmatprep.subr.mxu0 0.0
        %503 = vmatpush2.msra.mxu0 0.0
        %504 = vmatprep.subr.mxu0 0.0
        %505 = vmatpush2.msra.mxu0 0.0
        %506 = vmatprep.subr.mxu0 0.0
        %507 = vmatpush2.msra.mxu0 0.0
        %508 = vmatprep.subr.mxu0 0.0
        %509 = vmatpush2.msra.mxu0 0.0
        %510 = vmatprep.mubr.f32.mxu0 0.0
        %511 = vmatmul.mubr.f32.gmra.mxu0 %v442
        %v512 = vpop.f32.mrf.mxu0
        %v513 = vadd.f32 0.0, %v512
        %v514 = vpop.f32.mrf.mxu0
        %515 = vdwg.mxu0
        %v516 = vadd.f32 %v436, %v513
        %v517 = vld [vmem:[#allocation7] sm:$0xff]
        %519 = vset.pattern.permute.xlu0 0
        %520 = vperm.xlu0 %519, %v517
        %v521 = vpop.permute.xlu0 %520
        %v523 = vadd.f32 %v516, %v521
        %vm524 = vcmask 130048
        %v525 = vsel %vm524, %v523, 0.0
        %v526 = vrot.slane %v525, 4
        %v527 = vadd.f32 %v525, %v526
        %v528 = vrot.slane %v527, 2
        %v529 = vadd.f32 %v527, %v528
        %v530 = vrot.slane %v529, 1
        %v531 = vadd.f32 %v529, %v530
        %v532 = vrcp.pop 8.0
        %v533 = vmul.f32 %v531, %v532
        %v534 = vsub.f32 %v523, %v533
        %v535 = vmul.f32 %v534, %v534
        %v536 = vsel %vm524, %v535, 0.0
        %v537 = vrot.slane %v536, 4
        %v538 = vadd.f32 %v536, %v537
        %v539 = vrot.slane %v538, 2
        %v540 = vadd.f32 %v538, %v539
        %v541 = vrot.slane %v540, 1
        %v542 = vadd.f32 %v540, %v541
        %v543 = vmul.f32 %v542, %v532
        %v544 = vadd.f32 %v543, 1e-05
        %v545 = vrsqrt.pop %v544
        %v546 = vmul.f32 %v534, %v545
        %547 = vset.pattern.permute.xlu0 1
        %548 = vperm.xlu0 %547, %v517
        %v549 = vpop.permute.xlu0 %548
        %v551 = vmul.f32 %v546, %v549
        %552 = vset.pattern.permute.xlu0 2
        %553 = vperm.xlu0 %552, %v517
        %v554 = vpop.permute.xlu0 %553
        %v556 = vadd.f32 %v551, %v554
        %v557 = vld [vmem:[#allocation8] sm:$0xff]
        %558 = vset.pattern.permute.xlu0 3
        %559 = vperm.xlu0 %558, %v517
        %v560 = vpop.permute.xlu0 %559
        %v563 = vsel %vm282, %v557, 0
        %565 = vmatprep.subr.mxu0 0.0
        %566 = vmatpush1.msra.mxu0 0.0
        %567 = vmatprep.subr.mxu0 0.0
        %568 = vmatpush1.msra.mxu0 0.0
        %569 = vmatprep.subr.mxu0 0.0
        %570 = vmatpush1.msra.mxu0 0.0
        %571 = vmatprep.subr.mxu0 0.0
        %572 = vmatpush1.msra.mxu0 0.0
        %573 = vmatprep.subr.mxu0 0.0
        %574 = vmatpush1.msra.mxu0 0.0
        %575 = vmatprep.subr.mxu0 0.0
        %576 = vmatpush1.msra.mxu0 0.0
        %577 = vmatprep.subr.mxu0 0.0
        %578 = vmatpush1.msra.mxu0 0.0
        %579 = vmatprep.subr.mxu0 0.0
        %580 = vmatpush1.msra.mxu0 0.0
        %581 = vmatprep.subr.mxu0 0.0
        %582 = vmatpush1.msra.mxu0 0.0
        %583 = vmatprep.subr.mxu0 0.0
        %584 = vmatpush1.msra.mxu0 0.0
        %585 = vmatprep.subr.mxu0 0.0
        %586 = vmatpush1.msra.mxu0 0.0
        %587 = vmatprep.subr.mxu0 0.0
        %588 = vmatpush1.msra.mxu0 0.0
        %589 = vmatprep.subr.mxu0 0.0
        %590 = vmatpush1.msra.mxu0 0.0
        %591 = vmatprep.subr.mxu0 0.0
        %592 = vmatpush1.msra.mxu0 0.0
        %593 = vmatprep.subr.mxu0 0.0
        %594 = vmatpush1.msra.mxu0 0.0
        %595 = vmatprep.subr.mxu0 0.0
        %596 = vmatpush1.msra.mxu0 %v444
        %597 = vmatprep.subr.mxu0 0.0
        %598 = vmatpush2.msra.mxu0 0.0
        %599 = vmatprep.subr.mxu0 0.0
        %600 = vmatpush2.msra.mxu0 0.0
        %601 = vmatprep.subr.mxu0 0.0
        %602 = vmatpush2.msra.mxu0 0.0
        %603 = vmatprep.subr.mxu0 0.0
        %604 = vmatpush2.msra.mxu0 0.0
        %605 = vmatprep.subr.mxu0 0.0
        %606 = vmatpush2.msra.mxu0 0.0
        %607 = vmatprep.subr.mxu0 0.0
        %608 = vmatpush2.msra.mxu0 0.0
        %609 = vmatprep.subr.mxu0 0.0
        %610 = vmatpush2.msra.mxu0 0.0
        %611 = vmatprep.subr.mxu0 0.0
        %612 = vmatpush2.msra.mxu0 0.0
        %613 = vmatprep.subr.mxu0 0.0
        %614 = vmatpush2.msra.mxu0 0.0
        %615 = vmatprep.subr.mxu0 0.0
        %616 = vmatpush2.msra.mxu0 0.0
        %617 = vmatprep.subr.mxu0 0.0
        %618 = vmatpush2.msra.mxu0 0.0
        %619 = vmatprep.subr.mxu0 0.0
        %620 = vmatpush2.msra.mxu0 0.0
        %621 = vmatprep.subr.mxu0 0.0
        %622 = vmatpush2.msra.mxu0 0.0
        %623 = vmatprep.subr.mxu0 0.0
        %624 = vmatpush2.msra.mxu0 0.0
        %625 = vmatprep.subr.mxu0 0.0
        %626 = vmatpush2.msra.mxu0 0.0
        %627 = vmatprep.subr.mxu0 0.0
        %628 = vmatpush2.msra.mxu0 0.0
        %629 = vmatprep.mubr.f32.mxu0 0.0
        %630 = vmatmul.mubr.f32.gmra.mxu0 %v563
        %v631 = vpop.f32.mrf.mxu0
        %v632 = vadd.f32 %v560, %v631
        %v633 = vpop.f32.mrf.mxu0
        %634 = vdwg.mxu0
        %v635 = vadd.f32 %v556, %v632
        %v636 = vmax.f32 %v635, 0.0
        %637 = vst.msk [vmem:[%s269] sm:$0xff] %vm524, %v636
        %s638 = sand.u32 %s136, 1
        %s639 = scalar_lea.sflag [#allocation4], %s638
        %s640 = sand.u32 %s136, 1
        %s641 = smul.addr %s640, 8
        %s642 = scalar_lea.vmem [#allocation10], %s641
        // Predicated region
        $region53: #{_lambda_.1} parent=35 // pred_check
          %p643 = pneg %p146
        $region54: #{_lambda_.1} parent=35 // pred_check_branch
          %645 = sbr.rel (%p643) target = $region56
        $region55: #{_lambda_.1} parent=35 // pred_region
          %s647 = ssub.s32 128, 128
          %648 = vsyncadd %s639, %s647
          %s649 = sadd.s32 %s28, %s27
          %s650 = smul.addr %s649, 128
          %s651 = scalar_lea.hbm %s4, %s650
          %s653 = sshll.u32 %s642, 4
          %s654 = int_to_ptr.vmem [resolvable:$true] %s653
          %656 = dma.vmem_to_hbm [thread:$0]  %s654, 128, %s651, %s639
        $region56: #{_lambda_.1} parent=35 // pred_fallthru
          _
      $region36: #{_lambda_.1} parent=5 // pred_fallthru
        _
      %p657 = scmp.le.s32.totalorder 2, %s18
      // Predicated region
      $region57: #{_lambda_.1} parent=5 // pred_check
        %p658 = pneg %p657
      $region58: #{_lambda_.1} parent=5 // pred_check_branch
        %660 = sbr.rel (%p658) target = $region60
      $region59: #{_lambda_.1} parent=5 // pred_region
        %s661 = ssub.s32 %s18, 2
        // Predicated region
        $region61: #{_lambda_.1} parent=59 // pred_check
          %p662 = pneg %p152
        $region62: #{_lambda_.1} parent=59 // pred_check_branch
          %664 = sbr.rel (%p662) target = $region64
        $region63: #{_lambda_.1} parent=59 // pred_region
          %s665 = sand.u32 %s137, 1
          %s666 = scalar_lea.sflag [#allocation4], %s665
          %s667 = sand.u32 %s137, 1
          %s668 = smul.addr %s667, 8
          %s669 = scalar_lea.vmem [#allocation10], %s668
          %670 = dma.done %s666, 128
        $region64: #{_lambda_.1} parent=59 // pred_fallthru
          _
      $region60: #{_lambda_.1} parent=5 // pred_fallthru
        _
    $region6: #{_lambda_.1} parent=1 // loop_footer
      %s22 = sadd.s32 1, %s18
    $region7: #{_lambda_.1} parent=1 // loop_footer_branch
      %17 = sbr.rel target = $region3
    $region8: #{_lambda_.1} parent=1 // loop_exit
      _
    %671 = vsyncpa [#allocation3], 1
    %s672 = scalar_lea.sflag [#allocation3], 1
    %673 = vsyncpa %s672, 1
    %674 = vsyncpa [#allocation6], 1
    %675 = vsyncpa [#allocation9], 1
    %676 = vsyncpa [#allocation4], 1
    %s677 = scalar_lea.sflag [#allocation4], 1
    %678 = vsyncpa %s677, 1

</llo_original>
